<compile_context>
chip_gen: v5e
topology: v5e:2x2
jax: 0.10.0
libtpu: 0.0.40
codegen_flags: <defaults>
</compile_context>

<pallas_src>
import functools

import jax
import jax.numpy as jnp
from jax.experimental import pallas as pl
from jax.experimental.pallas import tpu as pltpu


def _round_up(x, m):
    return ((x + m - 1) // m) * m


def _vmem_budget_bytes():
    """Scoped-VMEM budget for this call. ~48 MiB on v5e/v6e, ~32 MiB on v7x."""
    default = 32 * 1024 * 1024
    try:
        info = pltpu.get_tpu_info()
        cap = getattr(info, "vmem_capacity_bytes", None)
        if cap:
            return int(min(max(default, cap // 2), 48 * 1024 * 1024))
    except Exception:
        pass
    return default


def _choose_fold(R, L):
    """Smallest k with L % k == 0 so that R*k is a multiple of 8 and >= 16.

    Folding (R, L) -> (R*k, L/k) makes rows sublane-dense for tiny R and gives
    the 'parallel' row axis >= 2 tiles (both TensorCores on v7x). The k partial
    sums per original row are added back in the JAX epilogue.
    """
    if R % 8 == 0 and R >= 16:
        return 1
    best = 1
    for k in range(1, 65):
        if L % k != 0:
            continue
        Rk = R * k
        if Rk % 8 == 0 and Rk >= 16:
            return k
        if Rk % 8 == 0 and best == 1:
            best = k
    return best


def _choose_row_tile(R):
    """Sublane-aligned row tile; >= 2 balanced tiles when possible."""
    if R >= 16 and R % 8 == 0:
        for cand in range(min(R // 2, 1024), 7, -1):
            if R % cand == 0 and cand % 8 == 0:
                return cand, R // cand
    return R, 1


def _choose_lane_block(row_tile, L, itemsize, tile_budget_bytes):
    """Largest 128-multiple lane tile fitting the per-block byte budget."""
    lane_full = _round_up(L, 128)
    max_lanes = (tile_budget_bytes // max(1, row_tile * itemsize)) // 128 * 128
    max_lanes = max(128, max_lanes)
    return int(min(lane_full, max_lanes))


def _dice_sums_kernel(x_ref, t_ref, out_ref, acc_xt, acc_xpt, *, L, lane_block):
    """Per row r of the current row tile: [sum(x*t), sum(x) + sum(t)]."""
    j = pl.program_id(1)            # lane (reduction) axis
    n_lane = pl.num_programs(1)

    @pl.when(j == 0)
    def _():
        acc_xt[...] = jnp.zeros_like(acc_xt)
        acc_xpt[...] = jnp.zeros_like(acc_xpt)

    x = x_ref[...].astype(jnp.float32)
    t = t_ref[...].astype(jnp.float32)

    def accumulate(xv, tv):
        # Cross-lane reductions go to the XLU (idle slot); only two tiny
        # (row_tile, 1) accumulator stores per step.
        acc_xt[...] += jnp.sum(xv * tv, axis=1, keepdims=True)
        acc_xpt[...] += jnp.sum(xv + tv, axis=1, keepdims=True)

    if L % lane_block != 0:
        # Only the last lane step carries the ragged tail; mask it there.
        @pl.when(j < n_lane - 1)
        def _():
            accumulate(x, t)

        @pl.when(j == n_lane - 1)
        def _():
            lane = jax.lax.broadcasted_iota(jnp.int32, x.shape, 1)
            valid = (j * lane_block + lane) < L
            accumulate(jnp.where(valid, x, 0.0), jnp.where(valid, t, 0.0))
    else:
        accumulate(x, t)

    # Finalize: one tiny store per column, once per row tile.
    @pl.when(j == n_lane - 1)
    def _():
        out_ref[:, 0:1] = acc_xt[...]
        out_ref[:, 1:2] = acc_xpt[...]


def _dice_sums(x2d, t2d):
    """x2d, t2d: (R, L). Returns (R, 2) f32 = [intersection, x_sum + t_sum]."""
    R, L = x2d.shape
    itemsize = max(jnp.dtype(x2d.dtype).itemsize, jnp.dtype(t2d.dtype).itemsize)

    vmem_budget = _vmem_budget_bytes()
    # 2 inputs x 2 pipeline buffers = 4x the per-input block, plus headroom.
    tile_budget = max(512 * 1024, (vmem_budget - (2 << 20)) // 5)

    row_tile, n_row = _choose_row_tile(R)
    lane_block = _choose_lane_block(row_tile, L, itemsize, tile_budget)
    n_lane = pl.cdiv(L, lane_block)

    kernel = functools.partial(_dice_sums_kernel, L=L, lane_block=lane_block)

    bytes_accessed = int(x2d.size * jnp.dtype(x2d.dtype).itemsize
                         + t2d.size * jnp.dtype(t2d.dtype).itemsize
                         + R * 2 * 4)

    return pl.pallas_call(
        kernel,
        out_shape=jax.ShapeDtypeStruct((R, 2), jnp.float32),
        grid_spec=pltpu.PrefetchScalarGridSpec(
            num_scalar_prefetch=0,
            grid=(n_row, n_lane),
            in_specs=[
                pl.BlockSpec((row_tile, lane_block), lambda i, j: (i, j)),
                pl.BlockSpec((row_tile, lane_block), lambda i, j: (i, j)),
            ],
            # Same output block across the lane axis -> resident per row tile.
            out_specs=pl.BlockSpec((row_tile, 2), lambda i, j: (i, 0)),
            scratch_shapes=[pltpu.VMEM((row_tile, 1), jnp.float32)] * 2,
        ),
        compiler_params=pltpu.CompilerParams(
            dimension_semantics=("parallel", "arbitrary"),
            vmem_limit_bytes=int(vmem_budget)),
        cost_estimate=pl.CostEstimate(
            flops=int(4 * R * L),
            transcendentals=0,
            bytes_accessed=bytes_accessed),
    )(x2d, t2d)


def multiclass_dice_loss(inp, target, weights=None):
    """Matches MulticlassDiceLoss.forward (DiceLoss with activation='none')."""
    N = target.shape[0]
    C = target.shape[1]
    R = N * C

    # Feed the kernel the original dtypes; upcast to f32 happens in-kernel.
    x2d = inp.reshape(R, -1)      # row = n*C + c
    t2d = target.reshape(R, -1)
    L = x2d.shape[1]

    k = _choose_fold(R, L)
    if k > 1:
        x2d = x2d.reshape(R * k, L // k)
        t2d = t2d.reshape(R * k, L // k)

    sums = _dice_sums(x2d, t2d)              # (R*k, 2)
    if k > 1:
        sums = sums.reshape(R, k, 2).sum(axis=1)
    sums = sums.reshape(N, C, 2)
    inter = sums[..., 0]
    xpt = sums[..., 1]                       # sum(x) + sum(t)

    smooth = 1.0
    per_sample = 2.0 * (inter + smooth) / (xpt + smooth)   # (N, C)
    per_class_loss = 1.0 - jnp.sum(per_sample, axis=0) / N  # (C,)
    if weights is not None:
        per_class_loss = per_class_loss * weights.astype(jnp.float32)
    return jnp.sum(per_class_loss)


def _reference_loss(inp, target, weights=None):
    """Plain-JAX transliteration of the PyTorch module, for verification."""
    N = target.shape[0]
    C = target.shape[1]
    total = 0.0
    for i in range(C):
        x = inp[:, i].astype(jnp.float32).reshape(N, -1)
        t = target[:, i].astype(jnp.float32).reshape(N, -1)
        inter = jnp.sum(x * t, axis=1)
        loss = 2.0 * (inter + 1.0) / (jnp.sum(x, axis=1) + jnp.sum(t, axis=1) + 1.0)
        loss = 1.0 - jnp.sum(loss) / N
        if weights is not None:
            loss = loss * weights[i]
        total = total + loss
    return total


if __name__ == "__main__":
    key = jax.random.PRNGKey(0)
    k1, k2 = jax.random.split(key, 2)

    N, C, H, W = 2, 4, 16, 16
    # "prediction": probabilities in [0, 1]
    x = jax.nn.softmax(jax.random.normal(k1, (N, C, H, W), dtype=jnp.float32), axis=1)
    # one-hot target along the class axis
    cls = jax.random.randint(k2, (N, H, W), 0, C)
    target = jax.nn.one_hot(cls, C, axis=1, dtype=jnp.float32)   # (N, C, H, W)
    # deterministic per-class weights (optional path of the module)
    weights = jnp.linspace(0.5, 1.5, C, dtype=jnp.float32)

    loss = multiclass_dice_loss(x, target, weights)
    loss = jax.block_until_ready(loss)

    ref = _reference_loss(x, target, weights)
    assert jnp.allclose(loss, ref, rtol=1e-5, atol=1e-5), (loss, ref)

    print("KERNEL_OK")
</pallas_src>

<mosaic_0001>
module attributes {stable_mosaic.version = 11 : i64} {
  func.func @_dice_sums_kernel(%arg0: i32, %arg1: i32, %arg2: memref<8x128xf32, #tpu.memory_space<vmem>>, %arg3: memref<8x128xf32, #tpu.memory_space<vmem>>, %arg4: memref<8x2xf32, #tpu.memory_space<vmem>>, %arg5: memref<8x1xf32, #tpu.memory_space<vmem>>, %arg6: memref<8x1xf32, #tpu.memory_space<vmem>>) attributes {dimension_semantics = [#tpu.dimension_semantics<parallel>, #tpu.dimension_semantics<arbitrary>], iteration_bounds = array<i64: 2, 1>, scalar_prefetch = 0 : i64, scratch_operands = 2 : i64, tpu.core_type = #tpu.core_type<tc>, window_params = [{transform_indices = @transform_0, window_bounds = array<i64: 8, 128>}, {transform_indices = @transform_1, window_bounds = array<i64: 8, 128>}, {transform_indices = @transform_2, window_bounds = array<i64: 8, 2>}]} {
    %c0_i32 = arith.constant 0 : i32
    %0 = arith.cmpi eq, %arg1, %c0_i32 : i32
    %1 = arith.extui %0 : i1 to i32
    %c0_i32_0 = arith.constant 0 : i32
    %2 = arith.cmpi ne, %1, %c0_i32_0 : i32
    scf.if %2 {
      %cst_15 = arith.constant 0.000000e+00 : f32
      %20 = vector.broadcast %cst_15 : f32 to vector<8x1xf32>
      %c0_16 = arith.constant 0 : index
      %c0_17 = arith.constant 0 : index
      %21 = vector.load %arg5[%c0_16, %c0_17] : memref<8x1xf32, #tpu.memory_space<vmem>>, vector<8x1xf32>
      tpu.vector_store %arg5[%c0_16, %c0_17], %20 {strides = array<i32>} : memref<8x1xf32, #tpu.memory_space<vmem>>, vector<8x1xf32>,
      %cst_18 = arith.constant 0.000000e+00 : f32
      %22 = vector.broadcast %cst_18 : f32 to vector<8x1xf32>
      %c0_19 = arith.constant 0 : index
      %c0_20 = arith.constant 0 : index
      %23 = vector.load %arg6[%c0_19, %c0_20] : memref<8x1xf32, #tpu.memory_space<vmem>>, vector<8x1xf32>
      tpu.vector_store %arg6[%c0_19, %c0_20], %22 {strides = array<i32>} : memref<8x1xf32, #tpu.memory_space<vmem>>, vector<8x1xf32>,
    } else {
    }
    %c0 = arith.constant 0 : index
    %c0_1 = arith.constant 0 : index
    %3 = vector.load %arg2[%c0, %c0_1] : memref<8x128xf32, #tpu.memory_space<vmem>>, vector<8x128xf32>
    %c0_2 = arith.constant 0 : index
    %c0_3 = arith.constant 0 : index
    %4 = vector.load %arg3[%c0_2, %c0_3] : memref<8x128xf32, #tpu.memory_space<vmem>>, vector<8x128xf32>
    %c0_4 = arith.constant 0 : index
    %c0_5 = arith.constant 0 : index
    %5 = vector.load %arg5[%c0_4, %c0_5] : memref<8x1xf32, #tpu.memory_space<vmem>>, vector<8x1xf32>
    %6 = arith.mulf %3, %4 : vector<8x128xf32>
    %cst = arith.constant dense<0.000000e+00> : vector<8xf32>
    %7 = vector.multi_reduction <add>, %6, %cst [1] : vector<8x128xf32> to vector<8xf32>
    %8 = vector.shape_cast %7 : vector<8xf32> to vector<8x1xf32>
    %9 = arith.addf %5, %8 : vector<8x1xf32>
    %c0_6 = arith.constant 0 : index
    %c0_7 = arith.constant 0 : index
    %10 = vector.load %arg5[%c0_6, %c0_7] : memref<8x1xf32, #tpu.memory_space<vmem>>, vector<8x1xf32>
    tpu.vector_store %arg5[%c0_6, %c0_7], %9 {strides = array<i32>} : memref<8x1xf32, #tpu.memory_space<vmem>>, vector<8x1xf32>,
    %c0_8 = arith.constant 0 : index
    %c0_9 = arith.constant 0 : index
    %11 = vector.load %arg6[%c0_8, %c0_9] : memref<8x1xf32, #tpu.memory_space<vmem>>, vector<8x1xf32>
    %12 = arith.addf %3, %4 : vector<8x128xf32>
    %cst_10 = arith.constant dense<0.000000e+00> : vector<8xf32>
    %13 = vector.multi_reduction <add>, %12, %cst_10 [1] : vector<8x128xf32> to vector<8xf32>
    %14 = vector.shape_cast %13 : vector<8xf32> to vector<8x1xf32>
    %15 = arith.addf %11, %14 : vector<8x1xf32>
    %c0_11 = arith.constant 0 : index
    %c0_12 = arith.constant 0 : index
    %16 = vector.load %arg6[%c0_11, %c0_12] : memref<8x1xf32, #tpu.memory_space<vmem>>, vector<8x1xf32>
    tpu.vector_store %arg6[%c0_11, %c0_12], %15 {strides = array<i32>} : memref<8x1xf32, #tpu.memory_space<vmem>>, vector<8x1xf32>,
    %c0_i32_13 = arith.constant 0 : i32
    %17 = arith.cmpi eq, %arg1, %c0_i32_13 : i32
    %18 = arith.extui %17 : i1 to i32
    %c0_i32_14 = arith.constant 0 : i32
    %19 = arith.cmpi ne, %18, %c0_i32_14 : i32
    scf.if %19 {
      %c0_15 = arith.constant 0 : index
      %c0_16 = arith.constant 0 : index
      %20 = vector.load %arg5[%c0_15, %c0_16] : memref<8x1xf32, #tpu.memory_space<vmem>>, vector<8x1xf32>
      %c0_17 = arith.constant 0 : index
      %c0_18 = arith.constant 0 : index
      %21 = vector.load %arg4[%c0_17, %c0_18] : memref<8x2xf32, #tpu.memory_space<vmem>>, vector<8x1xf32>
      tpu.vector_store %arg4[%c0_17, %c0_18], %20 {strides = array<i32>} : memref<8x2xf32, #tpu.memory_space<vmem>>, vector<8x1xf32>,
      %c0_19 = arith.constant 0 : index
      %c0_20 = arith.constant 0 : index
      %22 = vector.load %arg6[%c0_19, %c0_20] : memref<8x1xf32, #tpu.memory_space<vmem>>, vector<8x1xf32>
      %c0_21 = arith.constant 0 : index
      %c1 = arith.constant 1 : index
      %23 = vector.load %arg4[%c0_21, %c1] : memref<8x2xf32, #tpu.memory_space<vmem>>, vector<8x1xf32>
      tpu.vector_store %arg4[%c0_21, %c1], %22 {strides = array<i32>} : memref<8x2xf32, #tpu.memory_space<vmem>>, vector<8x1xf32>,
    } else {
    }
    return
  }
  func.func @transform_0(%arg0: i32, %arg1: i32) -> (i32, i32) {
    %c0_i32 = arith.constant 0 : i32
    return %arg0, %arg1 : i32, i32
  }
  func.func @transform_1(%arg0: i32, %arg1: i32) -> (i32, i32) {
    %c0_i32 = arith.constant 0 : i32
    return %arg0, %arg1 : i32, i32
  }
  func.func @transform_2(%arg0: i32, %arg1: i32) -> (i32, i32) {
    %c0_i32 = arith.constant 0 : i32
    %c0_i32_0 = arith.constant 0 : i32
    return %arg0, %c0_i32 : i32, i32
  }
}

</mosaic_0001>

<llo_original>
// kernel: tpu_custom_call.1
$region0: #{tpu_custom_call.1}
  #allocation0 [shape = 'u32[]', space=smem, size = 0x4, offset = 0x4, fixed_abs, tag = 'smem constant byte address 0x4 - core index']
  #allocation1 [shape = 'u32[72,128]{1,0:T(1,128)}', space=vmem, size = 0x9000, scoped, tag = 'internal scratch']
  #allocation2 [shape = 'f32[8,1]{1,0:T(8,128)}', space=vmem, size = 0x1000, scoped, tag = 'scratch operand']
  #allocation3 [shape = 'f32[8,1]{1,0:T(8,128)}', space=vmem, size = 0x1000, scoped, tag = 'scratch operand']
  %s0 = inlined_call_operand.hbm [shape: f32[16,128], index: 0, kind: input, shape index: {}]
  %s1 = inlined_call_operand.hbm [shape: f32[16,128], index: 1, kind: input, shape index: {}]
  %s2 = inlined_call_operand.vmem [shape: f32[16,2], index: 2, kind: output, shape index: {}]
  %s3 = sld [smem:[#allocation0]]
  $region57: #{tpu_custom_call.1} parent=0
    _
  %s5 = ssub.s32 1, %s3
  %s6 = scalar_select 0, %s5, %s3
  $region1: #{tpu_custom_call.1} parent=0
    #allocation4 [shape = 'u8[8192]{0}', space=vmem, size = 0x2000, scoped, tag = 'input window, operand 0']
    #allocation5 [shape = 's32[2]{0}', space=sflag, size = 0x8, scoped, tag = 'scoped memory for tpu_custom_call.1']
    #allocation6 [shape = 'u8[8192]{0}', space=vmem, size = 0x2000, scoped, tag = 'input window, operand 1']
    #allocation7 [shape = 's32[2]{0}', space=sflag, size = 0x8, scoped, tag = 'scoped memory for tpu_custom_call.1']
    %7 = vsyncpa [#allocation5], 0
    %s8 = scalar_lea.sflag [#allocation5], 1
    %9 = vsyncpa %s8, 0
    %10 = vsyncpa [#allocation7], 0
    %s11 = scalar_lea.sflag [#allocation7], 1
    %12 = vsyncpa %s11, 0
    loop: start=0, step=1, limit=4
    $region2: #{tpu_custom_call.1} parent=1 // loop_pre_header
      _
    $region3: #{tpu_custom_call.1} parent=1 // loop_header
      %s14 = sphi 0, %s18
      %p15 = scmp.ge.s32.totalorder %s14, 4
      %s21 = sphi 0, %s33
      %s22 = sphi 0, %s29
      %s23 = sphi 0, %s21
      %s24 = sphi 0, %s22
      %s25 = sphi 0, %s23
      %s26 = sphi 0, %s24
      %s38 = sphi 0, %s40
      %s41 = sphi 0, %s38
      %s42 = sphi 0, %s41
      %s58 = sphi 0, %s42
      %s66 = sphi 0, %s68
      %s69 = sphi 0, %s66
      %s70 = sphi 0, %s69
      %s86 = sphi 0, %s70
      %s92 = sphi 0, %s94
      %s95 = sphi 0, %s92
      %s96 = sphi 0, %s95
      %s112 = sphi 0, %s96
    $region4: #{tpu_custom_call.1} parent=1 // loop_header_branch
      %17 = sbr.rel (%p15) target = $region8
    $region5: #{tpu_custom_call.1} parent=1 // loop_body
      %s19 = ssub.s32 %s14, 1
      %s20 = ssub.s32 %s14, 2
      %s27 = sadd.s32 1, %s22
      %p28 = scmp.ge.s32.totalorder %s27, 1
      %s29 = scalar_select %p28, 0, %s27
      %s30 = sadd.s32 1, %s21
      %s31 = scalar_select %p28, %s30, %s21
      %p32 = scmp.ge.s32.totalorder %s31, 2
      %s33 = scalar_select %p32, 0, %s31
      %s34 = ssub.s32 %s21, %s33
      %s35 = ssub.s32 %s22, %s29
      %s36 = sor.u32 %s34, %s35
      %p37 = scmp.eq.s32.totalorder %s36, 0
      %s39 = sadd.s32 %s38, 1
      %s40 = scalar_select %p37, %s38, %s39
      %p43 = pneg %p37
      %p44 = scmp.eq.s32.totalorder %s14, 1
      %p45 = por %p43, %p44
      %p46 = scmp.ne.s32.totalorder %s38, %s41
      %p47 = scmp.eq.s32.totalorder %s14, 0
      %p48 = por %p46, %p47
      %p49 = scmp.ne.s32.totalorder %s38, %s41
      %p50 = scmp.eq.s32.totalorder %s19, 1
      %p51 = por %p49, %p50
      %p52 = scmp.ne.s32.totalorder %s41, %s42
      %p53 = scmp.eq.s32.totalorder %s19, 0
      %p54 = por %p52, %p53
      %p55 = scmp.ne.s32.totalorder %s41, %s42
      %p56 = scmp.eq.s32.totalorder %s20, 1
      %p57 = por %p55, %p56
      %p59 = scmp.ne.s32.totalorder %s42, %s58
      %p60 = scmp.eq.s32.totalorder %s20, 0
      %p61 = por %p59, %p60
      %s62 = ssub.s32 %s21, %s33
      %s63 = ssub.s32 %s22, %s29
      %s64 = sor.u32 %s62, %s63
      %p65 = scmp.eq.s32.totalorder %s64, 0
      %s67 = sadd.s32 %s66, 1
      %s68 = scalar_select %p65, %s66, %s67
      %p71 = pneg %p65
      %p72 = scmp.eq.s32.totalorder %s14, 1
      %p73 = por %p71, %p72
      %p74 = scmp.ne.s32.totalorder %s66, %s69
      %p75 = scmp.eq.s32.totalorder %s14, 0
      %p76 = por %p74, %p75
      %p77 = scmp.ne.s32.totalorder %s66, %s69
      %p78 = scmp.eq.s32.totalorder %s19, 1
      %p79 = por %p77, %p78
      %p80 = scmp.ne.s32.totalorder %s69, %s70
      %p81 = scmp.eq.s32.totalorder %s19, 0
      %p82 = por %p80, %p81
      %p83 = scmp.ne.s32.totalorder %s69, %s70
      %p84 = scmp.eq.s32.totalorder %s20, 1
      %p85 = por %p83, %p84
      %p87 = scmp.ne.s32.totalorder %s70, %s86
      %p88 = scmp.eq.s32.totalorder %s20, 0
      %p89 = por %p87, %p88
      %s90 = ssub.s32 %s21, %s33
      %p91 = scmp.eq.s32.totalorder %s90, 0
      %s93 = sadd.s32 %s92, 1
      %s94 = scalar_select %p91, %s92, %s93
      %p97 = pneg %p91
      %p98 = scmp.eq.s32.totalorder %s14, 1
      %p99 = por %p97, %p98
      %p100 = scmp.ne.s32.totalorder %s92, %s95
      %p101 = scmp.eq.s32.totalorder %s14, 0
      %p102 = por %p100, %p101
      %p103 = scmp.ne.s32.totalorder %s92, %s95
      %p104 = scmp.eq.s32.totalorder %s19, 1
      %p105 = por %p103, %p104
      %p106 = scmp.ne.s32.totalorder %s95, %s96
      %p107 = scmp.eq.s32.totalorder %s19, 0
      %p108 = por %p106, %p107
      %p109 = scmp.ne.s32.totalorder %s95, %s96
      %p110 = scmp.eq.s32.totalorder %s20, 1
      %p111 = por %p109, %p110
      %p113 = scmp.ne.s32.totalorder %s96, %s112
      %p114 = scmp.eq.s32.totalorder %s20, 0
      %p115 = por %p113, %p114
      %p116 = scmp.le.s32.totalorder 1, %s14
      %p117 = scmp.lt.s32.totalorder %s14, 3
      %p118 = pnand %p116, %p117
      %p119 = pneg %p118
      // Predicated region
      $region9: #{tpu_custom_call.1} parent=5 // pred_check
        _
      $region10: #{tpu_custom_call.1} parent=5 // pred_check_branch
        %121 = sbr.rel (%p118) target = $region12
      $region11: #{tpu_custom_call.1} parent=5 // pred_region
        %s122 = ssub.s32 %s14, 1
      $region12: #{tpu_custom_call.1} parent=5 // pred_fallthru
        _
      %p123 = scmp.lt.s32.totalorder %s14, 2
      // Predicated region
      $region13: #{tpu_custom_call.1} parent=5 // pred_check
        %p124 = pneg %p123
      $region14: #{tpu_custom_call.1} parent=5 // pred_check_branch
        %126 = sbr.rel (%p124) target = $region16
      $region15: #{tpu_custom_call.1} parent=5 // pred_region
        // Predicated region
        $region17: #{tpu_custom_call.1} parent=15 // pred_check
          %p127 = pneg %p48
        $region18: #{tpu_custom_call.1} parent=15 // pred_check_branch
          %129 = sbr.rel (%p127) target = $region20
        $region19: #{tpu_custom_call.1} parent=15 // pred_region
          %s130 = sand.u32 %s38, 1
          %s131 = scalar_lea.sflag [#allocation5], %s130
          %s132 = sand.u32 %s38, 1
          %s133 = smul.addr %s132, 8
          %s134 = scalar_lea.vmem [#allocation4], %s133
          %136 = vsyncadd %s131, 0
          %s137 = sadd.s32 %s22, %s21
          %s138 = smul.addr %s137, 8
          %s139 = scalar_lea.hbm %s0, %s138
          %s141 = sshll.u32 %s139, 4
          %s142 = int_to_ptr.hbm [resolvable:$true] %s141
          %s143 = sshll.u32 %s134, 4
          %s144 = int_to_ptr.vmem [resolvable:$true] %s143
          %146 = dma.hbm_to_vmem [thread:$0]  %s142, 128, %s144, %s131
        $region20: #{tpu_custom_call.1} parent=15 // pred_fallthru
          _
        // Predicated region
        $region21: #{tpu_custom_call.1} parent=15 // pred_check
          %p147 = pneg %p76
        $region22: #{tpu_custom_call.1} parent=15 // pred_check_branch
          %149 = sbr.rel (%p147) target = $region24
        $region23: #{tpu_custom_call.1} parent=15 // pred_region
          %s150 = sand.u32 %s66, 1
          %s151 = scalar_lea.sflag [#allocation7], %s150
          %s152 = sand.u32 %s66, 1
          %s153 = smul.addr %s152, 8
          %s154 = scalar_lea.vmem [#allocation6], %s153
          %156 = vsyncadd %s151, 0
          %s157 = sadd.s32 %s22, %s21
          %s158 = smul.addr %s157, 8
          %s159 = scalar_lea.hbm %s1, %s158
          %s161 = sshll.u32 %s159, 4
          %s162 = int_to_ptr.hbm [resolvable:$true] %s161
          %s163 = sshll.u32 %s154, 4
          %s164 = int_to_ptr.vmem [resolvable:$true] %s163
          %166 = dma.hbm_to_vmem [thread:$0]  %s162, 128, %s164, %s151
        $region24: #{tpu_custom_call.1} parent=15 // pred_fallthru
          _
      $region16: #{tpu_custom_call.1} parent=5 // pred_fallthru
        _
      %p167 = scmp.le.s32.totalorder 1, %s14
      %p168 = scmp.lt.s32.totalorder %s14, 3
      %p169 = pnand %p167, %p168
      %p170 = pneg %p169
      // Predicated region
      $region25: #{tpu_custom_call.1} parent=5 // pred_check
        _
      $region26: #{tpu_custom_call.1} parent=5 // pred_check_branch
        %172 = sbr.rel (%p169) target = $region28
      $region27: #{tpu_custom_call.1} parent=5 // pred_region
        %s173 = ssub.s32 %s14, 1
        %s174 = sand.u32 %s41, 1
        %s175 = scalar_lea.sflag [#allocation5], %s174
        %s176 = sand.u32 %s41, 1
        %s177 = smul.addr %s176, 8
        %s178 = scalar_lea.vmem [#allocation4], %s177
        // Predicated region
        $region29: #{tpu_custom_call.1} parent=27 // pred_check
          %p179 = pneg %p54
        $region30: #{tpu_custom_call.1} parent=27 // pred_check_branch
          %181 = sbr.rel (%p179) target = $region32
        $region31: #{tpu_custom_call.1} parent=27 // pred_region
          %183 = dma.done %s175, 128
        $region32: #{tpu_custom_call.1} parent=27 // pred_fallthru
          _
        %s184 = sand.u32 %s69, 1
        %s185 = scalar_lea.sflag [#allocation7], %s184
        %s186 = sand.u32 %s69, 1
        %s187 = smul.addr %s186, 8
        %s188 = scalar_lea.vmem [#allocation6], %s187
        // Predicated region
        $region33: #{tpu_custom_call.1} parent=27 // pred_check
          %p189 = pneg %p82
        $region34: #{tpu_custom_call.1} parent=27 // pred_check_branch
          %191 = sbr.rel (%p189) target = $region36
        $region35: #{tpu_custom_call.1} parent=27 // pred_region
          %193 = dma.done %s185, 128
        $region36: #{tpu_custom_call.1} parent=27 // pred_fallthru
          _
        %s194 = sand.u32 %s41, 1
        %s195 = scalar_lea.sflag [#allocation5], %s194
        %s196 = sand.u32 %s41, 1
        %s197 = smul.addr %s196, 8
        %s198 = scalar_lea.vmem [#allocation4], %s197
        %p199 = pneg %p54
        %p200 = pneg %p51
        %s201 = sand.u32 %s69, 1
        %s202 = scalar_lea.sflag [#allocation7], %s201
        %s203 = sand.u32 %s69, 1
        %s204 = smul.addr %s203, 8
        %s205 = scalar_lea.vmem [#allocation6], %s204
        %p206 = pneg %p82
        %p207 = pneg %p79
        %p208 = pneg %p108
        %p209 = pneg %p105
        %p210 = scmp.lt.s32.totalorder %s23, 1
        %s211 = scalar_select %p210, %s23, 1
        %s212 = smul.addr %s211, 8
        %s213 = scalar_lea.vmem %s2, %s212
        %p214 = scmp.lt.s32.totalorder %s23, 1
        %s215 = scalar_select %p214, %s23, 1
        %s216 = smul.addr %s215, 8
        %s217 = scalar_lea.vmem %s2, %s216
        %p218 = scmp.eq.s32.totalorder %s24, 0
        // Predicated region
        $region37: #{tpu_custom_call.1} parent=27 // pred_check
          %p219 = pneg %p218
        $region38: #{tpu_custom_call.1} parent=27 // pred_check_branch
          %221 = sbr.rel (%p219) target = $region40
        $region39: #{tpu_custom_call.1} parent=27 // pred_region
          %vm222 = vcmask 7168
          %223 = vst.msk [vmem:[#allocation2] sm:$0xff] %vm222, 0.0
          %224 = vst.msk [vmem:[#allocation3] sm:$0xff] %vm222, 0.0
        $region40: #{tpu_custom_call.1} parent=27 // pred_fallthru
          _
        %v225 = vld [vmem:[%s178] sm:$0xff]
        %v226 = vld [vmem:[%s188] sm:$0xff]
        %v227 = vld [vmem:[#allocation2] sm:$0xff]
        %v228 = vmul.f32 %v225, %v226
        %229 = vadd.xlane.f32.xlu0 %v228
        %v230 = vpop.xlane.xlu0 %229
        %v231 = vadd.f32 %v227, %v230
        %vm232 = vcmask 7168
        %233 = vst.msk [vmem:[#allocation2] sm:$0xff] %vm232, %v231
        %v234 = vld [vmem:[#allocation3] sm:$0xff]
        %v235 = vadd.f32 %v225, %v226
        %236 = vadd.xlane.f32.xlu0 %v235
        %v237 = vpop.xlane.xlu0 %236
        %v238 = vadd.f32 %v234, %v237
        %239 = vst.msk [vmem:[#allocation3] sm:$0xff] %vm232, %v238
        // Predicated region
        $region41: #{tpu_custom_call.1} parent=27 // pred_check
          %p240 = pneg %p218
        $region42: #{tpu_custom_call.1} parent=27 // pred_check_branch
          %242 = sbr.rel (%p240) target = $region44
        $region43: #{tpu_custom_call.1} parent=27 // pred_region
          %v243 = vld [vmem:[#allocation2] sm:$0xff]
          %244 = vst.msk [vmem:[%s217] sm:$0xff] %vm232, %v243
          %v245 = vld [vmem:[#allocation3] sm:$0xff]
          %247 = vrot.lane.b32.xlu0 %v245, 1
          %v248 = vpop.permute.xlu0 %247
          %vm250 = vcmask 15368
          %251 = vst.msk [vmem:[%s217] sm:$0xff] %vm250, %v248
        $region44: #{tpu_custom_call.1} parent=27 // pred_fallthru
          _
        %p252 = scmp.lt.s32.totalorder %s23, 1
        %s253 = scalar_select %p252, %s23, 1
        %s254 = smul.addr %s253, 8
        %s255 = scalar_lea.vmem %s2, %s254
        // Predicated region
        $region45: #{tpu_custom_call.1} parent=27 // pred_check
          %p256 = pneg %p105
        $region46: #{tpu_custom_call.1} parent=27 // pred_check_branch
          %258 = sbr.rel (%p256) target = $region48
        $region47: #{tpu_custom_call.1} parent=27 // pred_region
          _
        $region48: #{tpu_custom_call.1} parent=27 // pred_fallthru
          _
      $region28: #{tpu_custom_call.1} parent=5 // pred_fallthru
        _
      %p259 = scmp.le.s32.totalorder 2, %s14
      // Predicated region
      $region49: #{tpu_custom_call.1} parent=5 // pred_check
        %p260 = pneg %p259
      $region50: #{tpu_custom_call.1} parent=5 // pred_check_branch
        %262 = sbr.rel (%p260) target = $region52
      $region51: #{tpu_custom_call.1} parent=5 // pred_region
        %s263 = ssub.s32 %s14, 2
        // Predicated region
        $region53: #{tpu_custom_call.1} parent=51 // pred_check
          %p264 = pneg %p111
        $region54: #{tpu_custom_call.1} parent=51 // pred_check_branch
          %266 = sbr.rel (%p264) target = $region56
        $region55: #{tpu_custom_call.1} parent=51 // pred_region
          %p267 = scmp.lt.s32.totalorder %s25, 1
          %s268 = scalar_select %p267, %s25, 1
          %s269 = smul.addr %s268, 8
          %s270 = scalar_lea.vmem %s2, %s269
        $region56: #{tpu_custom_call.1} parent=51 // pred_fallthru
          _
      $region52: #{tpu_custom_call.1} parent=5 // pred_fallthru
        _
    $region6: #{tpu_custom_call.1} parent=1 // loop_footer
      %s18 = sadd.s32 1, %s14
    $region7: #{tpu_custom_call.1} parent=1 // loop_footer_branch
      %13 = sbr.rel target = $region3
    $region8: #{tpu_custom_call.1} parent=1 // loop_exit
      _
    %271 = vsyncpa [#allocation5], 1
    %s272 = scalar_lea.sflag [#allocation5], 1
    %273 = vsyncpa %s272, 1
    %274 = vsyncpa [#allocation7], 1
    %s275 = scalar_lea.sflag [#allocation7], 1
    %276 = vsyncpa %s275, 1

</llo_original>
